<compile_context>
chip_gen: v7x
topology: tpu7x:2x2x1
jax: 0.10.0
libtpu: 0.0.40
codegen_flags: <defaults>
</compile_context>

<pallas_src>
import jax
import jax.numpy as jnp
from jax import lax
from jax.experimental import pallas as pl
from jax.experimental.pallas import tpu as pltpu


def _phrase_attn_kernel(ctx_ref, emb_ref, lab_ref, w_ref, b_ref, attn_ref, wemb_ref):
    """One block of TB batch rows per grid step.

    ctx_ref : (TB, S, D)  context (natural layout, D on lanes)
    emb_ref : (TB, S, V)  word embeddings (V on lanes)
    lab_ref : (TB, S)     int32 labels (0 == pad)
    w_ref   : (1, D)      fc weight (f32)
    b_ref   : (1, 1)      fc bias (f32)
    attn_ref: (TB, S)     output attention weights (f32)
    wemb_ref: (TB, V)     output weighted embedding (f32)
    """
    ctx = ctx_ref[...].astype(jnp.float32)                               # (TB, S, D)
    w = w_ref[...].astype(jnp.float32)                                   # (1, D)

    # cxt_scores = fc(context): VPU broadcast-multiply + XLU lane reduce over D.
    scores = jnp.sum(ctx * w[None, :, :], axis=-1) + b_ref[...]          # (TB, S)

    # softmax * (labels != 0), renormalized.  softmax -> mask -> renorm is
    # algebraically exp(s - m) * mask / sum(exp(s - m) * mask).
    m = jnp.max(scores, axis=-1, keepdims=True)                          # (TB, 1)
    e = jnp.exp(scores - m)                                              # (TB, S)  EUP
    mask = (lab_ref[...] != 0).astype(jnp.float32)                       # (TB, S)
    em = e * mask
    denom = jnp.sum(em, axis=-1, keepdims=True)                          # (TB, 1)
    attn = em / denom                                                    # (TB, S)

    attn_ref[...] = attn.astype(attn_ref.dtype)

    # weighted_emb[b, v] = sum_s attn[b, s] * embedded[b, s, v]
    # VPU lane-broadcast multiply + sublane reduce over S (S is small; MXU stays idle).
    emb = emb_ref[...].astype(jnp.float32)                               # (TB, S, V)
    wemb = jnp.sum(attn[:, :, None] * emb, axis=1)                       # (TB, V)
    wemb_ref[...] = wemb.astype(wemb_ref.dtype)


def _choose_block_b(B, S, D, V, in_itemsize):
    """Pick TB (batch rows per grid step)."""
    # Bytes of one grid step's blocks per batch row (inputs + outputs).
    per_b = (S * D + S * V) * in_itemsize + S * 4 + (S + V) * 4
    # Conservative budget so 2x-buffered blocks + f32 temporaries stay well inside
    # v5e's 16 MiB scoped-VMEM default (and trivially inside v6e/v7x limits).
    budget = 2 * 1024 * 1024
    tb = max(1, budget // max(per_b, 1))
    if B > 8:
        # Keep at least 2 grid steps so both v7x TensorCores get work.
        tb = min(tb, pl.cdiv(B, 2))
    tb = int(min(tb, B))
    if tb < B:
        # Partial blocks must have a sublane-aligned leading dim.
        tb = max(8, (tb // 8) * 8)
    return tb


def phrase_attention_forward(context, embedded, input_labels, fc_weight, fc_bias):
    """Pallas implementation of PhraseAttention.forward.

    context      : (B, S, D) float (f32 or bf16 accepted, no upcast copy is made)
    embedded     : (B, S, V) float (f32 or bf16 accepted)
    input_labels : (B, S)    int
    fc_weight    : (1, D)    nn.Linear(D, 1).weight
    fc_bias      : (1,)      nn.Linear(D, 1).bias
    Returns (attn (B, S) float32, weighted_emb (B, V) float32).
    """
    B, S, D = context.shape
    V = embedded.shape[-1]

    labels = input_labels.astype(jnp.int32)                              # (B, S)
    w2d = fc_weight.astype(jnp.float32).reshape(1, D)
    b2d = fc_bias.astype(jnp.float32).reshape(1, 1)

    in_itemsize = max(jnp.dtype(context.dtype).itemsize,
                      jnp.dtype(embedded.dtype).itemsize)
    TB = _choose_block_b(B, S, D, V, in_itemsize)
    grid = (pl.cdiv(B, TB),)

    attn, wemb = pl.pallas_call(
        _phrase_attn_kernel,
        out_shape=(jax.ShapeDtypeStruct((B, S), jnp.float32),
                   jax.ShapeDtypeStruct((B, V), jnp.float32)),
        grid_spec=pltpu.PrefetchScalarGridSpec(
            num_scalar_prefetch=0,
            grid=grid,
            in_specs=[
                pl.BlockSpec((TB, S, D), lambda i: (i, 0, 0)),           # context
                pl.BlockSpec((TB, S, V), lambda i: (i, 0, 0)),           # embedded
                pl.BlockSpec((TB, S), lambda i: (i, 0)),                 # labels
                pl.BlockSpec((1, D), lambda i: (0, 0)),                  # fc weight (grid-constant)
                pl.BlockSpec((1, 1), lambda i: (0, 0)),                  # fc bias   (grid-constant)
            ],
            out_specs=[
                pl.BlockSpec((TB, S), lambda i: (i, 0)),                 # attn
                pl.BlockSpec((TB, V), lambda i: (i, 0)),                 # weighted_emb
            ],
        ),
        compiler_params=pltpu.CompilerParams(dimension_semantics=("parallel",)),
    )(context, embedded, labels, w2d, b2d)

    return attn, wemb


def reference_forward(context, embedded, input_labels, fc_weight, fc_bias):
    """Pure-JAX mirror of the PyTorch forward, for validation."""
    hp = lax.Precision.HIGHEST
    scores = jnp.einsum("bsd,d->bs", context.astype(jnp.float32),
                        fc_weight[0].astype(jnp.float32), precision=hp) + fc_bias[0]
    attn = jax.nn.softmax(scores, axis=-1)
    is_not_zero = (input_labels != 0).astype(jnp.float32)
    attn = attn * is_not_zero
    attn = attn / jnp.sum(attn, axis=1, keepdims=True)
    weighted_emb = jnp.einsum("bs,bsv->bv", attn,
                              embedded.astype(jnp.float32), precision=hp)
    return attn, weighted_emb


if __name__ == "__main__":
    key = jax.random.PRNGKey(0)
    B, S, D, V = 2, 8, 32, 32          # batch, seq_len, input_dim, word_vec_size

    k1, k2, k3, k4 = jax.random.split(key, 4)
    context = jax.random.normal(k1, (B, S, D), jnp.float32)
    embedded = jax.random.normal(k2, (B, S, V), jnp.float32)
    input_labels = jnp.array([[3, 7, 0, 12, 0, 5, 9, 0],
                              [1, 4, 2, 0, 0, 0, 8, 6]], dtype=jnp.int32)
    fc_weight = 0.1 * jax.random.normal(k3, (1, D), jnp.float32)
    fc_bias = 0.05 * jax.random.normal(k4, (1,), jnp.float32)

    attn, wemb = phrase_attention_forward(context, embedded, input_labels, fc_weight, fc_bias)
    attn = jax.block_until_ready(attn)
    wemb = jax.block_until_ready(wemb)

    ref_attn, ref_wemb = reference_forward(context, embedded, input_labels, fc_weight, fc_bias)
    ref_attn = jax.block_until_ready(ref_attn)
    ref_wemb = jax.block_until_ready(ref_wemb)

    assert attn.shape == (B, S) and wemb.shape == (B, V)
    attn_err = float(jnp.max(jnp.abs(attn - ref_attn)))
    wemb_scale = float(jnp.max(jnp.abs(ref_wemb))) + 1e-6
    wemb_err = float(jnp.max(jnp.abs(wemb - ref_wemb))) / wemb_scale
    assert attn_err < 1e-3, f"attn mismatch vs reference, abs err = {attn_err}"
    assert wemb_err < 1e-3, f"weighted_emb mismatch vs reference, rel err = {wemb_err}"
    print("KERNEL_OK")
</pallas_src>

<mosaic_0001>
module attributes {stable_mosaic.version = 11 : i64} {
  func.func @_phrase_attn_kernel(%arg0: i32, %arg1: memref<2x8x32xf32, #tpu.memory_space<vmem>>, %arg2: memref<2x8x32xf32, #tpu.memory_space<vmem>>, %arg3: memref<2x8xi32, #tpu.memory_space<vmem>>, %arg4: memref<1x32xf32, #tpu.memory_space<vmem>>, %arg5: memref<1x1xf32, #tpu.memory_space<vmem>>, %arg6: memref<2x8xf32, #tpu.memory_space<vmem>>, %arg7: memref<2x32xf32, #tpu.memory_space<vmem>>) attributes {dimension_semantics = [#tpu.dimension_semantics<parallel>], iteration_bounds = array<i64: 1>, scalar_prefetch = 0 : i64, scratch_operands = 0 : i64, tpu.core_type = #tpu.core_type<tc>, window_params = [{transform_indices = @transform_0, window_bounds = array<i64: 2, 8, 32>}, {transform_indices = @transform_1, window_bounds = array<i64: 2, 8, 32>}, {transform_indices = @transform_2, window_bounds = array<i64: 2, 8>}, {pipeline_mode = #tpu.pipeline_mode<synchronous>, transform_indices = @transform_3, window_bounds = array<i64: 1, 32>}, {pipeline_mode = #tpu.pipeline_mode<synchronous>, transform_indices = @transform_4, window_bounds = array<i64: 1, 1>}, {transform_indices = @transform_5, window_bounds = array<i64: 2, 8>}, {transform_indices = @transform_6, window_bounds = array<i64: 2, 32>}]} {
    %c0 = arith.constant 0 : index
    %c0_0 = arith.constant 0 : index
    %c0_1 = arith.constant 0 : index
    %0 = vector.load %arg1[%c0, %c0_0, %c0_1] : memref<2x8x32xf32, #tpu.memory_space<vmem>>, vector<2x8x32xf32>
    %c0_2 = arith.constant 0 : index
    %c0_3 = arith.constant 0 : index
    %1 = vector.load %arg4[%c0_2, %c0_3] : memref<1x32xf32, #tpu.memory_space<vmem>>, vector<1x32xf32>
    %2 = vector.shape_cast %1 : vector<1x32xf32> to vector<1x1x32xf32>
    %3 = vector.broadcast %2 : vector<1x1x32xf32> to vector<2x8x32xf32>
    %4 = arith.mulf %0, %3 : vector<2x8x32xf32>
    %cst = arith.constant dense<0.000000e+00> : vector<2x8xf32>
    %5 = vector.multi_reduction <add>, %4, %cst [2] : vector<2x8x32xf32> to vector<2x8xf32>
    %c0_4 = arith.constant 0 : index
    %c0_5 = arith.constant 0 : index
    %6 = vector.load %arg5[%c0_4, %c0_5] : memref<1x1xf32, #tpu.memory_space<vmem>>, vector<1x1xf32>
    %7 = vector.broadcast %6 : vector<1x1xf32> to vector<2x8xf32>
    %8 = arith.addf %5, %7 : vector<2x8xf32>
    %cst_6 = arith.constant dense<0xFF800000> : vector<2xf32>
    %9 = vector.multi_reduction <maximumf>, %8, %cst_6 [1] : vector<2x8xf32> to vector<2xf32>
    %10 = vector.shape_cast %9 : vector<2xf32> to vector<2x1xf32>
    %11 = vector.broadcast %10 : vector<2x1xf32> to vector<2x8xf32>
    %12 = arith.subf %8, %11 : vector<2x8xf32>
    %13 = math.exp %12 : vector<2x8xf32>
    %c0_7 = arith.constant 0 : index
    %c0_8 = arith.constant 0 : index
    %14 = vector.load %arg3[%c0_7, %c0_8] : memref<2x8xi32, #tpu.memory_space<vmem>>, vector<2x8xi32>
    %c0_i32 = arith.constant 0 : i32
    %15 = vector.broadcast %c0_i32 : i32 to vector<2x8xi32>
    %16 = arith.cmpi ne, %14, %15 : vector<2x8xi32>
    %17 = arith.extui %16 : vector<2x8xi1> to vector<2x8xi32>
    %18 = arith.sitofp %17 : vector<2x8xi32> to vector<2x8xf32>
    %19 = arith.mulf %13, %18 : vector<2x8xf32>
    %cst_9 = arith.constant dense<0.000000e+00> : vector<2xf32>
    %20 = vector.multi_reduction <add>, %19, %cst_9 [1] : vector<2x8xf32> to vector<2xf32>
    %21 = vector.shape_cast %20 : vector<2xf32> to vector<2x1xf32>
    %22 = vector.broadcast %21 : vector<2x1xf32> to vector<2x8xf32>
    %23 = arith.divf %19, %22 : vector<2x8xf32>
    %c0_10 = arith.constant 0 : index
    %c0_11 = arith.constant 0 : index
    %24 = vector.load %arg6[%c0_10, %c0_11] : memref<2x8xf32, #tpu.memory_space<vmem>>, vector<2x8xf32>
    tpu.vector_store %arg6[%c0_10, %c0_11], %23 {strides = array<i32>} : memref<2x8xf32, #tpu.memory_space<vmem>>, vector<2x8xf32>,
    %c0_12 = arith.constant 0 : index
    %c0_13 = arith.constant 0 : index
    %c0_14 = arith.constant 0 : index
    %25 = vector.load %arg2[%c0_12, %c0_13, %c0_14] : memref<2x8x32xf32, #tpu.memory_space<vmem>>, vector<2x8x32xf32>
    %26 = vector.shape_cast %23 : vector<2x8xf32> to vector<2x8x1xf32>
    %27 = vector.broadcast %26 : vector<2x8x1xf32> to vector<2x8x32xf32>
    %28 = arith.mulf %27, %25 : vector<2x8x32xf32>
    %cst_15 = arith.constant dense<0.000000e+00> : vector<2x32xf32>
    %29 = vector.multi_reduction <add>, %28, %cst_15 [1] : vector<2x8x32xf32> to vector<2x32xf32>
    %c0_16 = arith.constant 0 : index
    %c0_17 = arith.constant 0 : index
    %30 = vector.load %arg7[%c0_16, %c0_17] : memref<2x32xf32, #tpu.memory_space<vmem>>, vector<2x32xf32>
    tpu.vector_store %arg7[%c0_16, %c0_17], %29 {strides = array<i32>} : memref<2x32xf32, #tpu.memory_space<vmem>>, vector<2x32xf32>,
    return
  }
  func.func @transform_0(%arg0: i32) -> (i32, i32, i32) {
    %c0_i32 = arith.constant 0 : i32
    %c0_i32_0 = arith.constant 0 : i32
    %c0_i32_1 = arith.constant 0 : i32
    return %arg0, %c0_i32, %c0_i32_0 : i32, i32, i32
  }
  func.func @transform_1(%arg0: i32) -> (i32, i32, i32) {
    %c0_i32 = arith.constant 0 : i32
    %c0_i32_0 = arith.constant 0 : i32
    %c0_i32_1 = arith.constant 0 : i32
    return %arg0, %c0_i32, %c0_i32_0 : i32, i32, i32
  }
  func.func @transform_2(%arg0: i32) -> (i32, i32) {
    %c0_i32 = arith.constant 0 : i32
    %c0_i32_0 = arith.constant 0 : i32
    return %arg0, %c0_i32 : i32, i32
  }
  func.func @transform_3(%arg0: i32) -> (i32, i32) {
    %c0_i32 = arith.constant 0 : i32
    %c0_i32_0 = arith.constant 0 : i32
    %c0_i32_1 = arith.constant 0 : i32
    return %c0_i32, %c0_i32_0 : i32, i32
  }
  func.func @transform_4(%arg0: i32) -> (i32, i32) {
    %c0_i32 = arith.constant 0 : i32
    %c0_i32_0 = arith.constant 0 : i32
    %c0_i32_1 = arith.constant 0 : i32
    return %c0_i32, %c0_i32_0 : i32, i32
  }
  func.func @transform_5(%arg0: i32) -> (i32, i32) {
    %c0_i32 = arith.constant 0 : i32
    %c0_i32_0 = arith.constant 0 : i32
    return %arg0, %c0_i32 : i32, i32
  }
  func.func @transform_6(%arg0: i32) -> (i32, i32) {
    %c0_i32 = arith.constant 0 : i32
    %c0_i32_0 = arith.constant 0 : i32
    return %arg0, %c0_i32 : i32, i32
  }
}

</mosaic_0001>

<llo_original>
// kernel: tpu_custom_call.1
$region0: #{tpu_custom_call.1}
  #allocation0 [shape = 'u32[]', space=smem, size = 0x4, offset = 0x4, fixed_abs, tag = 'smem constant byte address 0x4 - core index']
  #allocation1 [shape = 'u32[144,128]{1,0:T(1,128)}', space=vmem, size = 0x12000, scoped, tag = 'internal scratch']
  #allocation2 [shape = 'f32[1,1]{1,0:T(1,128)S(1)}', space=vmem, size = 0x200, scoped, tag = 'scoped memory for tpu_custom_call.1']
  %s0 = inlined_call_operand.hbm [shape: f32[2,8,32], index: 0, kind: input, shape index: {}]
  %s1 = inlined_call_operand.hbm [shape: f32[2,8,32], index: 1, kind: input, shape index: {}]
  %s2 = inlined_call_operand.vmem [shape: s32[2,8], index: 2, kind: input, shape index: {}]
  %s3 = inlined_call_operand.vmem [shape: f32[1,32], index: 3, kind: input, shape index: {}]
  %s4 = inlined_call_operand.<no memory space> [shape: f32[1,1], index: 4, kind: input, shape index: {}]
  %s5 = inlined_call_operand.hbm [shape: f32[2,8], index: 5, kind: output, shape index: {0}]
  %s6 = inlined_call_operand.hbm [shape: f32[2,32], index: 6, kind: output, shape index: {1}]
  %7 = xla_tuple %s5, %s6
  %s8 = sld [smem:[#allocation0]]
  $region46: #{tpu_custom_call.1} parent=0
    _
  %s10 = ssub.s32 1, %s8
  %s11 = scalar_select 0, %s10, %s8
  %v12 = vstv %s4
  %13 = vst [vmem:[#allocation2] sm:$0x1] %v12
  $region1: #{tpu_custom_call.1} parent=0
    #allocation3 [shape = 'u8[8192]{0}', space=vmem, size = 0x2000, scoped, tag = 'input window, operand 0, single buffered']
    #allocation4 [shape = 's32[1]{0}', space=sflag, size = 0x4, scoped, tag = 'scoped memory for tpu_custom_call.1']
    #allocation5 [shape = 's32[1]{0}', space=sflag, size = 0x4, scoped, tag = 'scoped memory for tpu_custom_call.1']
    #allocation6 [shape = 'u8[8192]{0}', space=vmem, size = 0x2000, scoped, tag = 'input window, operand 1, single buffered']
    #allocation7 [shape = 's32[1]{0}', space=sflag, size = 0x4, scoped, tag = 'scoped memory for tpu_custom_call.1']
    #allocation8 [shape = 'u8[1024]{0}', space=vmem, size = 0x400, scoped, tag = 'output window, operand 0, single buffered']
    #allocation9 [shape = 'u8[1024]{0}', space=vmem, size = 0x400, scoped, tag = 'output window, operand 1, single buffered']
    #allocation10 [shape = 's32[1]{0}', space=sflag, size = 0x4, scoped, tag = 'scoped memory for tpu_custom_call.1']
    %14 = vsyncpa [#allocation4], 0
    %15 = vsyncpa [#allocation7], 0
    %16 = vsyncpa [#allocation5], 0
    %17 = vsyncpa [#allocation10], 0
    // Predicated region
    $region2: #{tpu_custom_call.1} parent=1 // pred_check
      _
    $region3: #{tpu_custom_call.1} parent=1 // pred_check_branch
      %19 = sbr.rel (0) target = $region5
    $region4: #{tpu_custom_call.1} parent=1 // pred_region
      %s21 = ssub.s32 256, 256
      %22 = vsyncadd [#allocation4], %s21
      %s23 = sshll.u32 [#allocation3], 4
      %s24 = int_to_ptr.vmem [resolvable:$true] %s23
      %29 = dma.hbm_to_vmem [thread:$0]  %s0, 256, %s24, [#allocation4], 128, 128, 8
    $region5: #{tpu_custom_call.1} parent=1 // pred_fallthru
      _
    // Predicated region
    $region6: #{tpu_custom_call.1} parent=1 // pred_check
      _
    $region7: #{tpu_custom_call.1} parent=1 // pred_check_branch
      %31 = sbr.rel (0) target = $region9
    $region8: #{tpu_custom_call.1} parent=1 // pred_region
      %s33 = ssub.s32 256, 256
      %34 = vsyncadd [#allocation7], %s33
      %s35 = sshll.u32 [#allocation6], 4
      %s36 = int_to_ptr.vmem [resolvable:$true] %s35
      %41 = dma.hbm_to_vmem [thread:$0]  %s1, 256, %s36, [#allocation7], 128, 128, 8
    $region9: #{tpu_custom_call.1} parent=1 // pred_fallthru
      _
    // Predicated region
    $region10: #{tpu_custom_call.1} parent=1 // pred_check
      _
    $region11: #{tpu_custom_call.1} parent=1 // pred_check_branch
      %43 = sbr.rel (0) target = $region13
    $region12: #{tpu_custom_call.1} parent=1 // pred_region
      _
    $region13: #{tpu_custom_call.1} parent=1 // pred_fallthru
      _
    // Predicated region
    $region14: #{tpu_custom_call.1} parent=1 // pred_check
      _
    $region15: #{tpu_custom_call.1} parent=1 // pred_check_branch
      %45 = sbr.rel (0) target = $region17
    $region16: #{tpu_custom_call.1} parent=1 // pred_region
      _
    $region17: #{tpu_custom_call.1} parent=1 // pred_fallthru
      _
    // Predicated region
    $region18: #{tpu_custom_call.1} parent=1 // pred_check
      _
    $region19: #{tpu_custom_call.1} parent=1 // pred_check_branch
      %47 = sbr.rel (0) target = $region21
    $region20: #{tpu_custom_call.1} parent=1 // pred_region
      _
    $region21: #{tpu_custom_call.1} parent=1 // pred_fallthru
      _
    // Predicated region
    $region22: #{tpu_custom_call.1} parent=1 // pred_check
      _
    $region23: #{tpu_custom_call.1} parent=1 // pred_check_branch
      %49 = sbr.rel (0) target = $region25
    $region24: #{tpu_custom_call.1} parent=1 // pred_region
      %50 = dma.done [#allocation4], 256
    $region25: #{tpu_custom_call.1} parent=1 // pred_fallthru
      _
    // Predicated region
    $region26: #{tpu_custom_call.1} parent=1 // pred_check
      _
    $region27: #{tpu_custom_call.1} parent=1 // pred_check_branch
      %52 = sbr.rel (0) target = $region29
    $region28: #{tpu_custom_call.1} parent=1 // pred_region
      %53 = dma.done [#allocation7], 256
    $region29: #{tpu_custom_call.1} parent=1 // pred_fallthru
      _
    %v54 = vld [vmem:[#allocation3] sm:$0xff]
    %v55 = vld [vmem:[#allocation3 + $0x8] sm:$0xff]
    %v56 = vld [vmem:[%s3] sm:$0x1]
    %v58 = vlaneseq
    %v59 = vshrl.u32 %v58, 7
    %v60 = vsub.s32 0, %v59
    %v61 = vrot.slane %v56, %v60
    %v63 = vmul.f32 %v54, %v61
    %v64 = vmul.f32 %v55, %v61
    %vm65 = vcmask 261120
    %v66 = vsel %vm65, %v63, 0.0
    %67 = vadd.xlane.f32.xlu0 %v66
    %v68 = vpop.xlane.xlu0 %67
    %v69 = vsel %vm65, %v64, 0.0
    %70 = vadd.xlane.f32.xlu0 %v69
    %v71 = vpop.xlane.xlu0 %70
    %v72 = vld [vmem:[#allocation2] sm:$0x1]
    %v74 = vlaneseq
    %v75 = vshrl.u32 %v74, 7
    %v76 = vsub.s32 0, %v75
    %v77 = vrot.slane %v72, %v76
    %78 = vset.pattern.permute.xlu0 0
    %79 = vperm.xlu0 %78, %v77
    %v80 = vpop.permute.xlu0 %79
    %v82 = vadd.f32 %v68, %v80
    %v83 = vadd.f32 %v71, %v80
    %v86 = vlaneseq
    %v87 = vand.u32 %v86, 127
    %v88 = vlaneseq
    %v89 = vshrl.u32 %v88, 7
    %v90 = vsub.s32 %v87, %v89
    %v91 = vrot.slane %v82, %v90
    %v92 = vlaneseq
    %v93 = vshrl.u32 %v92, 7
    %v94 = vsub.s32 %v87, %v93
    %v95 = vrot.slane %v83, %v94
    %vm96 = vcmask 1041409
    %v97 = vsel %vm96, %v95, %v91
    %vm99 = vcmask 58368
    %v100 = vsel %vm99, %v97, -inf
    %101 = vmax.xlane.f32.xlu0 %v100
    %v102 = vpop.xlane.xlu0 %101
    %v104 = vlaneseq
    %v105 = vshrl.u32 %v104, 7
    %v106 = vsub.s32 0, %v105
    %v107 = vrot.slane %v102, %v106
    %v108 = vlaneseq
    %v109 = vshrl.u32 %v108, 7
    %v110 = vsub.s32 1, %v109
    %v111 = vrot.slane %v102, %v110
    %v114 = vsub.f32 %v82, %v107
    %v115 = vsub.f32 %v83, %v111
    %v116 = vmul.f32 %v114, 1.442695
    %v117 = vpow.pop %v116
    %v118 = vmul.f32 %v115, 1.442695
    %v119 = vpow.pop %v118
    %v120 = vld [vmem:[%s2] sm:$0x3]
    %vm121 = vcmp.ne.s32.totalorder %v120, 0
    %v122 = vsel %vm121, 1, 0
    %v123 = vcvt.s32.f32 %v122
    %v125 = vlaneseq
    %v126 = vshrl.u32 %v125, 7
    %v127 = vsub.s32 0, %v126
    %v128 = vrot.slane %v123, %v127
    %130 = vbcast.lane.b32.xlu0 %v128, 256
    %v131 = vpop.permute.xlu0 %130
    %v132 = vlaneseq
    %v133 = vshrl.u32 %v132, 7
    %v134 = vsub.s32 1, %v133
    %v135 = vrot.slane %v123, %v134
    %137 = vbcast.lane.b32.xlu0 %v135, 256
    %v138 = vpop.permute.xlu0 %137
    %v141 = vmul.f32 %v117, %v131
    %v142 = vmul.f32 %v119, %v138
    %145 = vset.pattern.permute.xlu0 0
    %146 = vperm.xlu0 %145, %v141
    %v147 = vpop.permute.xlu0 %146
    %148 = vset.pattern.permute.xlu0 0
    %149 = vperm.xlu0 %148, %v142
    %v150 = vpop.permute.xlu0 %149
    %v151 = vlaneseq
    %v152 = vshrl.u32 %v151, 7
    %v153 = vsub.s32 %v87, %v152
    %v154 = vrot.slane %v147, %v153
    %v155 = vlaneseq
    %v156 = vshrl.u32 %v155, 7
    %v157 = vsub.s32 %v87, %v156
    %v158 = vrot.slane %v150, %v157
    %v159 = vsel %vm96, %v158, %v154
    %v161 = vsel %vm99, %v159, 0.0
    %162 = vadd.xlane.f32.xlu0 %v161
    %v163 = vpop.xlane.xlu0 %162
    %v165 = vlaneseq
    %v166 = vshrl.u32 %v165, 7
    %v167 = vsub.s32 0, %v166
    %v168 = vrot.slane %v163, %v167
    %v169 = vlaneseq
    %v170 = vshrl.u32 %v169, 7
    %v171 = vsub.s32 1, %v170
    %v172 = vrot.slane %v163, %v171
    %v175 = vrcp.pop %v168
    %v176 = vmul.f32 %v141, %v175
    %v177 = vrcp.pop %v172
    %v178 = vmul.f32 %v142, %v177
    %181 = vset.pattern.permute.xlu0 0
    %182 = vperm.xlu0 %181, %v176
    %v183 = vpop.permute.xlu0 %182
    %184 = vset.pattern.permute.xlu0 0
    %185 = vperm.xlu0 %184, %v178
    %v186 = vpop.permute.xlu0 %185
    %v187 = vlaneseq
    %v188 = vshrl.u32 %v187, 7
    %v189 = vsub.s32 %v87, %v188
    %v190 = vrot.slane %v183, %v189
    %v191 = vlaneseq
    %v192 = vshrl.u32 %v191, 7
    %v193 = vsub.s32 %v87, %v192
    %v194 = vrot.slane %v186, %v193
    %v195 = vsel %vm96, %v194, %v190
    %197 = vst.msk [vmem:[#allocation8] sm:$0x3] %vm99, %v195
    %v198 = vld [vmem:[#allocation6] sm:$0xff]
    %v199 = vld [vmem:[#allocation6 + $0x8] sm:$0xff]
    %v202 = vmul.f32 %v183, %v198
    %v203 = vmul.f32 %v186, %v199
    %v204 = vsel %vm65, %v202, 0.0
    %v205 = vrot.slane %v204, 4
    %v206 = vadd.f32 %v204, %v205
    %v207 = vrot.slane %v206, 2
    %v208 = vadd.f32 %v206, %v207
    %v209 = vrot.slane %v208, 1
    %v210 = vadd.f32 %v208, %v209
    %v211 = vsel %vm65, %v203, 0.0
    %v212 = vrot.slane %v211, 4
    %v213 = vadd.f32 %v211, %v212
    %v214 = vrot.slane %v213, 2
    %v215 = vadd.f32 %v213, %v214
    %v216 = vrot.slane %v215, 1
    %v217 = vadd.f32 %v215, %v216
    %v220 = vsel %vm96, %v217, %v210
    %vm222 = vcmask 254976
    %223 = vst.msk [vmem:[#allocation9] sm:$0x3] %vm222, %v220
    // Predicated region
    $region30: #{tpu_custom_call.1} parent=1 // pred_check
      _
    $region31: #{tpu_custom_call.1} parent=1 // pred_check_branch
      %225 = sbr.rel (0) target = $region33
    $region32: #{tpu_custom_call.1} parent=1 // pred_region
      %s227 = ssub.s32 32, 32
      %228 = vsyncadd [#allocation5], %s227
      %s230 = sshll.u32 [#allocation8], 4
      %s231 = int_to_ptr.vmem [resolvable:$true] %s230
      %233 = dma.vmem_to_hbm [thread:$0]  %s231, 32, %s5, [#allocation5]
    $region33: #{tpu_custom_call.1} parent=1 // pred_fallthru
      _
    // Predicated region
    $region34: #{tpu_custom_call.1} parent=1 // pred_check
      _
    $region35: #{tpu_custom_call.1} parent=1 // pred_check_branch
      %235 = sbr.rel (0) target = $region37
    $region36: #{tpu_custom_call.1} parent=1 // pred_region
      %s237 = ssub.s32 32, 32
      %238 = vsyncadd [#allocation10], %s237
      %s240 = sshll.u32 [#allocation9], 4
      %s241 = int_to_ptr.vmem [resolvable:$true] %s240
      %243 = dma.vmem_to_hbm [thread:$0]  %s241, 32, %s6, [#allocation10]
    $region37: #{tpu_custom_call.1} parent=1 // pred_fallthru
      _
    // Predicated region
    $region38: #{tpu_custom_call.1} parent=1 // pred_check
      _
    $region39: #{tpu_custom_call.1} parent=1 // pred_check_branch
      %245 = sbr.rel (0) target = $region41
    $region40: #{tpu_custom_call.1} parent=1 // pred_region
      %246 = dma.done [#allocation5], 32
    $region41: #{tpu_custom_call.1} parent=1 // pred_fallthru
      _
    // Predicated region
    $region42: #{tpu_custom_call.1} parent=1 // pred_check
      _
    $region43: #{tpu_custom_call.1} parent=1 // pred_check_branch
      %248 = sbr.rel (0) target = $region45
    $region44: #{tpu_custom_call.1} parent=1 // pred_region
      %249 = dma.done [#allocation10], 32
    $region45: #{tpu_custom_call.1} parent=1 // pred_fallthru
      _
    %250 = vsyncpa [#allocation4], 1
    %251 = vsyncpa [#allocation7], 1
    %252 = vsyncpa [#allocation5], 1
    %253 = vsyncpa [#allocation10], 1

</llo_original>
